<compile_context>
chip_gen: v7x
topology: tpu7x:2x2x1
jax: 0.10.0
libtpu: 0.0.40
codegen_flags: <defaults>
</compile_context>

<pallas_src>
import functools

import jax
import jax.numpy as jnp
from jax import lax
from jax.experimental import pallas as pl
from jax.experimental.pallas import tpu as pltpu

INP_SIZE = 3      # logical input size of the module
INP_PAD = 8       # zero-padded input width (sublane-friendly; semantics unchanged)
N_NEURONS = 128
OUT_SIZE = 2

H = N_NEURONS
# row layout of the packed weight slab w_all (5H, H):
#   [0:128)   w2      (in_layer second Linear)
#   [128:256) w_ih    (RNNCell input projection)
#   [256:384) w_hh    (RNNCell recurrent projection)
#   [384:512) w3      (out_layer first Linear)
#   [512:640) w4_pad  (out_layer second Linear, N padded 2 -> 128)
# row layout of the bias slab b_all (8,128):
#   0: b1, 1: b2, 2: b_ih + b_hh, 3: b3, 4: b4_pad, 5-7: zeros


# ---------------------------------------------------------------------------
# rollout kernel: one grid step processes `chunk` timesteps.
#   Phase 1 (batched): x2[t] and u[t] = x2[t] @ W_ih + (b_ih + b_hh) for all t
#   Phase 2 (serial):  h = relu(u[t] + h @ W_hh)           <- only serial matmul
#   Phase 3 (batched): y[t] = relu(h[t] @ W3 + b3); acc[t] = y[t] @ W4 + b4
# Hidden state carried across chunks inside hfin_ref (constant block index).
# ---------------------------------------------------------------------------
def _rollout_kernel(inp_ref, h0_ref, w1_ref, wall_ref, b_ref,
                    acc_ref, hfin_ref, u_scr, hall_scr, *, chunk, batch):
    @pl.when(pl.program_id(0) == 0)
    def _():
        hfin_ref[...] = h0_ref[...]

    b = b_ref[...]                                    # (8, H) f32, loaded once
    b1, b2, brnn, b3, b4 = b[0:1], b[1:2], b[2:3], b[3:4], b[4:5]

    # ---- Phase 1: batched non-recurrent front layers over all chunk*batch rows
    x1 = jnp.maximum(
        jnp.dot(inp_ref[...].astype(jnp.bfloat16), w1_ref[...],
                preferred_element_type=jnp.float32) + b1, 0.0)
    x2 = jnp.maximum(
        jnp.dot(x1.astype(jnp.bfloat16), wall_ref[0:H, :],
                preferred_element_type=jnp.float32) + b2, 0.0)
    # RNNCell input projection is also non-recurrent; both cell biases folded in.
    u_scr[...] = jnp.dot(x2.astype(jnp.bfloat16), wall_ref[H:2 * H, :],
                         preferred_element_type=jnp.float32) + brnn

    # ---- Phase 2: serial recurrence; only h @ W_hh is on the critical chain
    w_hh = wall_ref[2 * H:3 * H, :]                   # (H, H) bf16, hoisted

    def step(t, h):
        r = pl.multiple_of(t * batch, 8)
        h_new = jnp.maximum(
            u_scr[pl.ds(r, batch), :]
            + jnp.dot(h.astype(jnp.bfloat16), w_hh,
                      preferred_element_type=jnp.float32), 0.0)
        hall_scr[pl.ds(r, batch), :] = h_new
        return h_new

    h_fin = lax.fori_loop(0, chunk, step, hfin_ref[...], unroll=True)
    hfin_ref[...] = h_fin                             # carries to next chunk

    # ---- Phase 3: batched non-recurrent output layers (lane-dense acc slab)
    y = jnp.maximum(
        jnp.dot(hall_scr[...].astype(jnp.bfloat16), wall_ref[3 * H:4 * H, :],
                preferred_element_type=jnp.float32) + b3, 0.0)
    acc_ref[...] = (jnp.dot(y.astype(jnp.bfloat16), wall_ref[4 * H:5 * H, :],
                            preferred_element_type=jnp.float32) + b4)


def rnn_recursive_rollout(inp_seq, h0, params, *, chunk=None):
    """inp_seq:(T,B,INP_SIZE) f32, h0:(B,H) f32
    -> (acc_seq (T,B,OUT_SIZE) f32, h_final (B,H) f32)."""
    T, B, _ = inp_seq.shape
    assert B % 8 == 0, "batch must be a multiple of 8 (sublane alignment)"
    if chunk is None:
        chunk = T
    assert T % chunk == 0
    n_chunks = T // chunk

    inp_flat = jnp.pad(
        inp_seq, ((0, 0), (0, 0), (0, INP_PAD - inp_seq.shape[2]))
    ).reshape(T * B, INP_PAD)

    kernel = functools.partial(_rollout_kernel, chunk=chunk, batch=B)
    grid_spec = pltpu.PrefetchScalarGridSpec(
        num_scalar_prefetch=0,
        grid=(n_chunks,),
        in_specs=[
            pl.BlockSpec((chunk * B, INP_PAD), lambda c: (c, 0)),  # streamed chunk
            pl.BlockSpec((B, H), lambda c: (0, 0)),                # h0 (resident)
            pl.BlockSpec((INP_PAD, H), lambda c: (0, 0)),          # w1 (resident)
            pl.BlockSpec((5 * H, H), lambda c: (0, 0)),            # packed weights
            pl.BlockSpec((8, H), lambda c: (0, 0)),                # packed biases
        ],
        out_specs=(
            pl.BlockSpec((chunk * B, H), lambda c: (c, 0)),        # acc per chunk
            pl.BlockSpec((B, H), lambda c: (0, 0)),                # final hidden
        ),
        scratch_shapes=[
            pltpu.VMEM((chunk * B, H), jnp.float32),   # u[t] (precomputed cell input)
            pltpu.VMEM((chunk * B, H), jnp.float32),   # h[t] (for batched W3/W4)
        ],
    )
    acc_flat, h_fin = pl.pallas_call(
        kernel,
        out_shape=(
            jax.ShapeDtypeStruct((T * B, H), jnp.float32),   # lane-dense acc slab
            jax.ShapeDtypeStruct((B, H), jnp.float32),
        ),
        grid_spec=grid_spec,
        compiler_params=pltpu.CompilerParams(
            dimension_semantics=("arbitrary",)),   # h carries across chunks: sequential
    )(inp_flat, h0, params["w1"], params["w_all"], params["b_all"])
    acc_seq = acc_flat.reshape(T, B, H)[:, :, :OUT_SIZE]
    return acc_seq, h_fin


def rnn_recursive_forward(inp, h_old, params):
    """Single step (the module's forward signature): inp:(B,INP_SIZE), h_old:(B,H)."""
    acc_seq, h_new = rnn_recursive_rollout(inp[None], h_old, params)
    return acc_seq[0], h_new


# ---------------------------------------------------------------------------
# params + pure-JAX reference
# ---------------------------------------------------------------------------
def init_params(key):
    """Deterministic synthetic params, PyTorch-style init bounds. Linear weights
    (out,in) are stored pre-transposed as (in,out); big matrices packed + bf16."""
    ks = jax.random.split(key, 12)
    O = OUT_SIZE

    def u(k, shape, fan_in):
        bound = 1.0 / jnp.sqrt(jnp.float32(fan_in))
        return jax.random.uniform(k, shape, jnp.float32, -bound, bound)

    w1 = jnp.zeros((INP_PAD, H), jnp.float32).at[:INP_SIZE, :].set(
        u(ks[0], (INP_SIZE, H), INP_SIZE))
    b1 = u(ks[1], (H,), INP_SIZE)
    w2 = u(ks[2], (H, H), H);   b2 = u(ks[3], (H,), H)
    wih = u(ks[4], (H, H), H);  bih = u(ks[5], (H,), H)
    whh = u(ks[6], (H, H), H);  bhh = u(ks[7], (H,), H)
    w3 = u(ks[8], (H, H), H);   b3 = u(ks[9], (H,), H)
    w4 = u(ks[10], (H, O), H);  b4 = u(ks[11], (O,), H)

    w4p = jnp.zeros((H, H), jnp.float32).at[:, :O].set(w4)      # lane-dense N pad
    b4p = jnp.zeros((H,), jnp.float32).at[:O].set(b4)

    w_all = jnp.concatenate([w2, wih, whh, w3, w4p], axis=0)    # (5H, H)
    b_all = (jnp.zeros((8, H), jnp.float32)
             .at[0].set(b1).at[1].set(b2).at[2].set(bih + bhh)
             .at[3].set(b3).at[4].set(b4p))

    return dict(w1=w1.astype(jnp.bfloat16),
                w_all=w_all.astype(jnp.bfloat16),
                b_all=b_all)


def reference_forward(inp, h_old, p):
    """Pure-JAX f32 reference using the same (bf16-stored) weights."""
    w1 = p["w1"].astype(jnp.float32)[:INP_SIZE, :]
    wall = p["w_all"].astype(jnp.float32)
    w2, wih, whh, w3, w4 = (wall[0:H], wall[H:2 * H], wall[2 * H:3 * H],
                            wall[3 * H:4 * H], wall[4 * H:5 * H])
    b = p["b_all"]
    x = jnp.maximum(inp @ w1 + b[0], 0.0)
    x = jnp.maximum(x @ w2 + b[1], 0.0)
    h_new = jnp.maximum(x @ wih + h_old @ whh + b[2], 0.0)
    y = jnp.maximum(h_new @ w3 + b[3], 0.0)
    acc = (y @ w4 + b[4])[:, :OUT_SIZE]
    return acc, h_new


if __name__ == "__main__":
    key = jax.random.PRNGKey(0)
    k_inp, k_h, k_p, k_seq = jax.random.split(key, 4)

    B, T = 8, 8
    inp = jax.random.normal(k_inp, (B, INP_SIZE), jnp.float32)
    h_old = jax.random.normal(k_h, (B, N_NEURONS), jnp.float32)
    inp_seq = jax.random.normal(k_seq, (T, B, INP_SIZE), jnp.float32)
    params = init_params(k_p)

    # --- single step (module forward) ---
    acc, h_new = jax.jit(
        functools.partial(rnn_recursive_forward, params=params))(inp, h_old)
    jax.block_until_ready((acc, h_new))
    acc_ref, h_ref = reference_forward(inp, h_old, params)
    assert acc.shape == (B, OUT_SIZE) and h_new.shape == (B, N_NEURONS)
    # bf16 weights/activations on the MXU -> loosened tolerance vs f32 reference
    assert jnp.allclose(acc, acc_ref, atol=2e-2, rtol=2e-2)
    assert jnp.allclose(h_new, h_ref, atol=2e-2, rtol=2e-2)

    # --- recursive rollout: T=8 steps, chunked as 2 grid steps of 4 timesteps
    #     (exercises the cross-chunk hidden-state carry in hfin_ref) ---
    acc_seq, h_fin = jax.jit(
        functools.partial(rnn_recursive_rollout, params=params, chunk=4))(inp_seq, h_old)
    jax.block_until_ready((acc_seq, h_fin))
    h_r = h_old
    accs = []
    for t in range(T):
        a_t, h_r = reference_forward(inp_seq[t], h_r, params)
        accs.append(a_t)
    acc_seq_ref = jnp.stack(accs, axis=0)
    assert acc_seq.shape == (T, B, OUT_SIZE) and h_fin.shape == (B, N_NEURONS)
    assert jnp.allclose(acc_seq, acc_seq_ref, atol=5e-2, rtol=5e-2)
    assert jnp.allclose(h_fin, h_r, atol=5e-2, rtol=5e-2)

    # --- same rollout collapsed to a single grid point (chunk = T) ---
    acc_seq2, h_fin2 = jax.jit(
        functools.partial(rnn_recursive_rollout, params=params))(inp_seq, h_old)
    jax.block_until_ready((acc_seq2, h_fin2))
    assert jnp.allclose(acc_seq2, acc_seq_ref, atol=5e-2, rtol=5e-2)
    assert jnp.allclose(h_fin2, h_r, atol=5e-2, rtol=5e-2)

    print("KERNEL_OK")
</pallas_src>

<mosaic_0001>
module attributes {stable_mosaic.version = 11 : i64} {
  func.func @_rollout_kernel(%arg0: i32, %arg1: memref<8x8xf32, #tpu.memory_space<vmem>>, %arg2: memref<8x128xf32, #tpu.memory_space<vmem>>, %arg3: memref<8x128xbf16, #tpu.memory_space<vmem>>, %arg4: memref<640x128xbf16, #tpu.memory_space<vmem>>, %arg5: memref<8x128xf32, #tpu.memory_space<vmem>>, %arg6: memref<8x128xf32, #tpu.memory_space<vmem>>, %arg7: memref<8x128xf32, #tpu.memory_space<vmem>>, %arg8: memref<8x128xf32, #tpu.memory_space<vmem>>, %arg9: memref<8x128xf32, #tpu.memory_space<vmem>>) attributes {dimension_semantics = [#tpu.dimension_semantics<arbitrary>], iteration_bounds = array<i64: 1>, scalar_prefetch = 0 : i64, scratch_operands = 2 : i64, tpu.core_type = #tpu.core_type<tc>, window_params = [{transform_indices = @transform_0, window_bounds = array<i64: 8, 8>}, {pipeline_mode = #tpu.pipeline_mode<synchronous>, transform_indices = @transform_1, window_bounds = array<i64: 8, 128>}, {pipeline_mode = #tpu.pipeline_mode<synchronous>, transform_indices = @transform_2, window_bounds = array<i64: 8, 128>}, {pipeline_mode = #tpu.pipeline_mode<synchronous>, transform_indices = @transform_3, window_bounds = array<i64: 640, 128>}, {pipeline_mode = #tpu.pipeline_mode<synchronous>, transform_indices = @transform_4, window_bounds = array<i64: 8, 128>}, {transform_indices = @transform_5, window_bounds = array<i64: 8, 128>}, {pipeline_mode = #tpu.pipeline_mode<synchronous>, transform_indices = @transform_6, window_bounds = array<i64: 8, 128>}]} {
    %c0_i32 = arith.constant 0 : i32
    %0 = arith.cmpi eq, %arg0, %c0_i32 : i32
    %1 = arith.extui %0 : i1 to i32
    %c0_i32_0 = arith.constant 0 : i32
    %2 = arith.cmpi ne, %1, %c0_i32_0 : i32
    scf.if %2 {
      %c0_34 = arith.constant 0 : index
      %c0_35 = arith.constant 0 : index
      %58 = vector.load %arg2[%c0_34, %c0_35] : memref<8x128xf32, #tpu.memory_space<vmem>>, vector<8x128xf32>
      %c0_36 = arith.constant 0 : index
      %c0_37 = arith.constant 0 : index
      %59 = vector.load %arg7[%c0_36, %c0_37] : memref<8x128xf32, #tpu.memory_space<vmem>>, vector<8x128xf32>
      tpu.vector_store %arg7[%c0_36, %c0_37], %58 {strides = array<i32>} : memref<8x128xf32, #tpu.memory_space<vmem>>, vector<8x128xf32>,
    } else {
    }
    %c0 = arith.constant 0 : index
    %c0_1 = arith.constant 0 : index
    %3 = vector.load %arg5[%c0, %c0_1] : memref<8x128xf32, #tpu.memory_space<vmem>>, vector<8x128xf32>
    %4 = vector.extract_strided_slice %3 {offsets = [0, 0], sizes = [1, 128], strides = [1, 1]} : vector<8x128xf32> to vector<1x128xf32>
    %5 = vector.extract_strided_slice %3 {offsets = [1, 0], sizes = [1, 128], strides = [1, 1]} : vector<8x128xf32> to vector<1x128xf32>
    %6 = vector.extract_strided_slice %3 {offsets = [2, 0], sizes = [1, 128], strides = [1, 1]} : vector<8x128xf32> to vector<1x128xf32>
    %7 = vector.extract_strided_slice %3 {offsets = [3, 0], sizes = [1, 128], strides = [1, 1]} : vector<8x128xf32> to vector<1x128xf32>
    %8 = vector.extract_strided_slice %3 {offsets = [4, 0], sizes = [1, 128], strides = [1, 1]} : vector<8x128xf32> to vector<1x128xf32>
    %c0_2 = arith.constant 0 : index
    %c0_3 = arith.constant 0 : index
    %9 = vector.load %arg1[%c0_2, %c0_3] : memref<8x8xf32, #tpu.memory_space<vmem>>, vector<8x8xf32>
    %10 = arith.truncf %9 : vector<8x8xf32> to vector<8x8xbf16>
    %c0_4 = arith.constant 0 : index
    %c0_5 = arith.constant 0 : index
    %11 = vector.load %arg3[%c0_4, %c0_5] : memref<8x128xbf16, #tpu.memory_space<vmem>>, vector<8x128xbf16>
    %cst = arith.constant dense<0.000000e+00> : vector<8x128xf32>
    %12 = tpu.matmul %10, %11, %cst {dimension_numbers = #tpu.dot_dimension_numbers<[1], [0], [0], [1], [0, 0, 1, 1], [], []>} : vector<8x8xbf16>, vector<8x128xbf16>, vector<8x128xf32> -> vector<8x128xf32>
    %13 = vector.broadcast %4 : vector<1x128xf32> to vector<8x128xf32>
    %14 = arith.addf %12, %13 : vector<8x128xf32>
    %cst_6 = arith.constant 0.000000e+00 : f32
    %15 = vector.broadcast %cst_6 : f32 to vector<8x128xf32>
    %16 = arith.maximumf %14, %15 : vector<8x128xf32>
    %17 = arith.truncf %16 : vector<8x128xf32> to vector<8x128xbf16>
    %c0_7 = arith.constant 0 : index
    %c0_8 = arith.constant 0 : index
    %18 = vector.load %arg4[%c0_7, %c0_8] : memref<640x128xbf16, #tpu.memory_space<vmem>>, vector<128x128xbf16>
    %cst_9 = arith.constant dense<0.000000e+00> : vector<8x128xf32>
    %19 = tpu.matmul %17, %18, %cst_9 {dimension_numbers = #tpu.dot_dimension_numbers<[1], [0], [0], [1], [0, 0, 1, 1], [], []>} : vector<8x128xbf16>, vector<128x128xbf16>, vector<8x128xf32> -> vector<8x128xf32>
    %20 = vector.broadcast %5 : vector<1x128xf32> to vector<8x128xf32>
    %21 = arith.addf %19, %20 : vector<8x128xf32>
    %cst_10 = arith.constant 0.000000e+00 : f32
    %22 = vector.broadcast %cst_10 : f32 to vector<8x128xf32>
    %23 = arith.maximumf %21, %22 : vector<8x128xf32>
    %24 = arith.truncf %23 : vector<8x128xf32> to vector<8x128xbf16>
    %c128 = arith.constant 128 : index
    %c0_11 = arith.constant 0 : index
    %25 = vector.load %arg4[%c128, %c0_11] : memref<640x128xbf16, #tpu.memory_space<vmem>>, vector<128x128xbf16>
    %cst_12 = arith.constant dense<0.000000e+00> : vector<8x128xf32>
    %26 = tpu.matmul %24, %25, %cst_12 {dimension_numbers = #tpu.dot_dimension_numbers<[1], [0], [0], [1], [0, 0, 1, 1], [], []>} : vector<8x128xbf16>, vector<128x128xbf16>, vector<8x128xf32> -> vector<8x128xf32>
    %27 = vector.broadcast %6 : vector<1x128xf32> to vector<8x128xf32>
    %28 = arith.addf %26, %27 : vector<8x128xf32>
    %c0_13 = arith.constant 0 : index
    %c0_14 = arith.constant 0 : index
    %29 = vector.load %arg8[%c0_13, %c0_14] : memref<8x128xf32, #tpu.memory_space<vmem>>, vector<8x128xf32>
    tpu.vector_store %arg8[%c0_13, %c0_14], %28 {strides = array<i32>} : memref<8x128xf32, #tpu.memory_space<vmem>>, vector<8x128xf32>,
    %c256 = arith.constant 256 : index
    %c0_15 = arith.constant 0 : index
    %30 = vector.load %arg4[%c256, %c0_15] : memref<640x128xbf16, #tpu.memory_space<vmem>>, vector<128x128xbf16>
    %c0_16 = arith.constant 0 : index
    %c0_17 = arith.constant 0 : index
    %31 = vector.load %arg7[%c0_16, %c0_17] : memref<8x128xf32, #tpu.memory_space<vmem>>, vector<8x128xf32>
    %c0_i32_18 = arith.constant 0 : i32
    %c8_i32 = arith.constant 8 : i32
    %32 = arith.muli %c0_i32_18, %c8_i32 : i32
    %33 = tpu.assume_multiple %32, 8 : i32
    %34 = arith.index_cast %33 : i32 to index
    %c0_19 = arith.constant 0 : index
    %35 = vector.load %arg8[%34, %c0_19] : memref<8x128xf32, #tpu.memory_space<vmem>>, vector<8x128xf32>
    %36 = arith.truncf %31 : vector<8x128xf32> to vector<8x128xbf16>
    %cst_20 = arith.constant dense<0.000000e+00> : vector<8x128xf32>
    %37 = tpu.matmul %36, %30, %cst_20 {dimension_numbers = #tpu.dot_dimension_numbers<[1], [0], [0], [1], [0, 0, 1, 1], [], []>} : vector<8x128xbf16>, vector<128x128xbf16>, vector<8x128xf32> -> vector<8x128xf32>
    %38 = arith.addf %35, %37 : vector<8x128xf32>
    %cst_21 = arith.constant 0.000000e+00 : f32
    %39 = vector.broadcast %cst_21 : f32 to vector<8x128xf32>
    %40 = arith.maximumf %38, %39 : vector<8x128xf32>
    %41 = arith.index_cast %33 : i32 to index
    %c0_22 = arith.constant 0 : index
    %42 = vector.load %arg9[%41, %c0_22] : memref<8x128xf32, #tpu.memory_space<vmem>>, vector<8x128xf32>
    tpu.vector_store %arg9[%41, %c0_22], %40 {strides = array<i32>} : memref<8x128xf32, #tpu.memory_space<vmem>>, vector<8x128xf32>,
    %c1_i32 = arith.constant 1 : i32
    %c0_23 = arith.constant 0 : index
    %c0_24 = arith.constant 0 : index
    %43 = vector.load %arg7[%c0_23, %c0_24] : memref<8x128xf32, #tpu.memory_space<vmem>>, vector<8x128xf32>
    tpu.vector_store %arg7[%c0_23, %c0_24], %40 {strides = array<i32>} : memref<8x128xf32, #tpu.memory_space<vmem>>, vector<8x128xf32>,
    %c0_25 = arith.constant 0 : index
    %c0_26 = arith.constant 0 : index
    %44 = vector.load %arg9[%c0_25, %c0_26] : memref<8x128xf32, #tpu.memory_space<vmem>>, vector<8x128xf32>
    %45 = arith.truncf %44 : vector<8x128xf32> to vector<8x128xbf16>
    %c384 = arith.constant 384 : index
    %c0_27 = arith.constant 0 : index
    %46 = vector.load %arg4[%c384, %c0_27] : memref<640x128xbf16, #tpu.memory_space<vmem>>, vector<128x128xbf16>
    %cst_28 = arith.constant dense<0.000000e+00> : vector<8x128xf32>
    %47 = tpu.matmul %45, %46, %cst_28 {dimension_numbers = #tpu.dot_dimension_numbers<[1], [0], [0], [1], [0, 0, 1, 1], [], []>} : vector<8x128xbf16>, vector<128x128xbf16>, vector<8x128xf32> -> vector<8x128xf32>
    %48 = vector.broadcast %7 : vector<1x128xf32> to vector<8x128xf32>
    %49 = arith.addf %47, %48 : vector<8x128xf32>
    %cst_29 = arith.constant 0.000000e+00 : f32
    %50 = vector.broadcast %cst_29 : f32 to vector<8x128xf32>
    %51 = arith.maximumf %49, %50 : vector<8x128xf32>
    %52 = arith.truncf %51 : vector<8x128xf32> to vector<8x128xbf16>
    %c512 = arith.constant 512 : index
    %c0_30 = arith.constant 0 : index
    %53 = vector.load %arg4[%c512, %c0_30] : memref<640x128xbf16, #tpu.memory_space<vmem>>, vector<128x128xbf16>
    %cst_31 = arith.constant dense<0.000000e+00> : vector<8x128xf32>
    %54 = tpu.matmul %52, %53, %cst_31 {dimension_numbers = #tpu.dot_dimension_numbers<[1], [0], [0], [1], [0, 0, 1, 1], [], []>} : vector<8x128xbf16>, vector<128x128xbf16>, vector<8x128xf32> -> vector<8x128xf32>
    %55 = vector.broadcast %8 : vector<1x128xf32> to vector<8x128xf32>
    %56 = arith.addf %54, %55 : vector<8x128xf32>
    %c0_32 = arith.constant 0 : index
    %c0_33 = arith.constant 0 : index
    %57 = vector.load %arg6[%c0_32, %c0_33] : memref<8x128xf32, #tpu.memory_space<vmem>>, vector<8x128xf32>
    tpu.vector_store %arg6[%c0_32, %c0_33], %56 {strides = array<i32>} : memref<8x128xf32, #tpu.memory_space<vmem>>, vector<8x128xf32>,
    return
  }
  func.func @transform_0(%arg0: i32) -> (i32, i32) {
    %c0_i32 = arith.constant 0 : i32
    %c0_i32_0 = arith.constant 0 : i32
    return %arg0, %c0_i32 : i32, i32
  }
  func.func @transform_1(%arg0: i32) -> (i32, i32) {
    %c0_i32 = arith.constant 0 : i32
    %c0_i32_0 = arith.constant 0 : i32
    %c0_i32_1 = arith.constant 0 : i32
    return %c0_i32, %c0_i32_0 : i32, i32
  }
  func.func @transform_2(%arg0: i32) -> (i32, i32) {
    %c0_i32 = arith.constant 0 : i32
    %c0_i32_0 = arith.constant 0 : i32
    %c0_i32_1 = arith.constant 0 : i32
    return %c0_i32, %c0_i32_0 : i32, i32
  }
  func.func @transform_3(%arg0: i32) -> (i32, i32) {
    %c0_i32 = arith.constant 0 : i32
    %c0_i32_0 = arith.constant 0 : i32
    %c0_i32_1 = arith.constant 0 : i32
    return %c0_i32, %c0_i32_0 : i32, i32
  }
  func.func @transform_4(%arg0: i32) -> (i32, i32) {
    %c0_i32 = arith.constant 0 : i32
    %c0_i32_0 = arith.constant 0 : i32
    %c0_i32_1 = arith.constant 0 : i32
    return %c0_i32, %c0_i32_0 : i32, i32
  }
  func.func @transform_5(%arg0: i32) -> (i32, i32) {
    %c0_i32 = arith.constant 0 : i32
    %c0_i32_0 = arith.constant 0 : i32
    return %arg0, %c0_i32 : i32, i32
  }
  func.func @transform_6(%arg0: i32) -> (i32, i32) {
    %c0_i32 = arith.constant 0 : i32
    %c0_i32_0 = arith.constant 0 : i32
    %c0_i32_1 = arith.constant 0 : i32
    return %c0_i32, %c0_i32_0 : i32, i32
  }
}

</mosaic_0001>

<llo_original>
// kernel: rnn_recursive_forward.1
$region0: #{rnn_recursive_forward.1}
  #allocation0 [shape = 'u32[]', space=smem, size = 0x4, offset = 0x4, fixed_abs, tag = 'smem constant byte address 0x4 - core index']
  #allocation1 [shape = 'u32[144,128]{1,0:T(1,128)}', space=vmem, size = 0x12000, scoped, tag = 'internal scratch']
  #allocation2 [shape = 'f32[8,128]{1,0:T(8,128)}', space=vmem, size = 0x1000, scoped, tag = 'scratch operand']
  #allocation3 [shape = 'f32[8,128]{1,0:T(8,128)}', space=vmem, size = 0x1000, scoped, tag = 'scratch operand']
  %s0 = inlined_call_operand.vmem [shape: f32[8,8], index: 0, kind: input, shape index: {}]
  %s1 = inlined_call_operand.vmem [shape: f32[8,128], index: 1, kind: input, shape index: {}]
  %s2 = inlined_call_operand.vmem [shape: bf16[8,128], index: 2, kind: input, shape index: {}]
  %s3 = inlined_call_operand.hbm [shape: bf16[640,128], index: 3, kind: input, shape index: {}]
  %s4 = inlined_call_operand.vmem [shape: f32[8,128], index: 4, kind: input, shape index: {}]
  %s5 = inlined_call_operand.vmem [shape: f32[8,128], index: 5, kind: output, shape index: {0}]
  %s6 = inlined_call_operand.hbm [shape: f32[8,128], index: 6, kind: output, shape index: {1}]
  %7 = xla_tuple %s5, %s6
  %s8 = sld [smem:[#allocation0]]
  $region46: #{rnn_recursive_forward.1} parent=0
    _
  %s10 = ssub.s32 1, %s8
  %s11 = scalar_select 0, %s10, %s8
  $region1: #{rnn_recursive_forward.1} parent=0
    #allocation4 [shape = 'u8[163840]{0}', space=vmem, size = 0x28000, scoped, tag = 'input window, operand 3, single buffered']
    #allocation5 [shape = 's32[1]{0}', space=sflag, size = 0x4, scoped, tag = 'scoped memory for rnn_recursive_forward.1']
    #allocation6 [shape = 's32[1]{0}', space=sflag, size = 0x4, scoped, tag = 'scoped memory for rnn_recursive_forward.1']
    #allocation7 [shape = 'u8[4096]{0}', space=vmem, size = 0x1000, scoped, tag = 'output window, operand 1, single buffered']
    %12 = vsyncpa [#allocation5], 0
    %13 = vsyncpa [#allocation6], 0
    // Predicated region
    $region2: #{rnn_recursive_forward.1} parent=1 // pred_check
      _
    $region3: #{rnn_recursive_forward.1} parent=1 // pred_check_branch
      %15 = sbr.rel (0) target = $region5
    $region4: #{rnn_recursive_forward.1} parent=1 // pred_region
      _
    $region5: #{rnn_recursive_forward.1} parent=1 // pred_fallthru
      _
    // Predicated region
    $region6: #{rnn_recursive_forward.1} parent=1 // pred_check
      _
    $region7: #{rnn_recursive_forward.1} parent=1 // pred_check_branch
      %17 = sbr.rel (0) target = $region9
    $region8: #{rnn_recursive_forward.1} parent=1 // pred_region
      _
    $region9: #{rnn_recursive_forward.1} parent=1 // pred_fallthru
      _
    // Predicated region
    $region10: #{rnn_recursive_forward.1} parent=1 // pred_check
      _
    $region11: #{rnn_recursive_forward.1} parent=1 // pred_check_branch
      %19 = sbr.rel (0) target = $region13
    $region12: #{rnn_recursive_forward.1} parent=1 // pred_region
      _
    $region13: #{rnn_recursive_forward.1} parent=1 // pred_fallthru
      _
    // Predicated region
    $region14: #{rnn_recursive_forward.1} parent=1 // pred_check
      _
    $region15: #{rnn_recursive_forward.1} parent=1 // pred_check_branch
      %21 = sbr.rel (0) target = $region17
    $region16: #{rnn_recursive_forward.1} parent=1 // pred_region
      %s23 = ssub.s32 5120, 5120
      %24 = vsyncadd [#allocation5], %s23
      %s25 = sshll.u32 [#allocation4], 4
      %s26 = int_to_ptr.vmem [resolvable:$true] %s25
      %31 = dma.hbm_to_vmem [thread:$0]  %s3, 5120, %s26, [#allocation5], 64, 64, 4
    $region17: #{rnn_recursive_forward.1} parent=1 // pred_fallthru
      _
    // Predicated region
    $region18: #{rnn_recursive_forward.1} parent=1 // pred_check
      _
    $region19: #{rnn_recursive_forward.1} parent=1 // pred_check_branch
      %33 = sbr.rel (0) target = $region21
    $region20: #{rnn_recursive_forward.1} parent=1 // pred_region
      _
    $region21: #{rnn_recursive_forward.1} parent=1 // pred_fallthru
      _
    // Predicated region
    $region22: #{rnn_recursive_forward.1} parent=1 // pred_check
      _
    $region23: #{rnn_recursive_forward.1} parent=1 // pred_check_branch
      %35 = sbr.rel (0) target = $region25
    $region24: #{rnn_recursive_forward.1} parent=1 // pred_region
      %36 = dma.done [#allocation5], 5120
    $region25: #{rnn_recursive_forward.1} parent=1 // pred_fallthru
      _
    %p38 = scmp.eq.s32.totalorder 0, 0
    // Predicated region
    $region26: #{rnn_recursive_forward.1} parent=1 // pred_check
      %p39 = pneg %p38
    $region27: #{rnn_recursive_forward.1} parent=1 // pred_check_branch
      %41 = sbr.rel (%p39) target = $region29
    $region28: #{rnn_recursive_forward.1} parent=1 // pred_region
      %v42 = vld [vmem:[%s1] sm:$0xff]
      %43 = vst [vmem:[#allocation7] sm:$0xff] %v42
    $region29: #{rnn_recursive_forward.1} parent=1 // pred_fallthru
      _
    %v44 = vld [vmem:[%s4] sm:$0xff]
    %v45 = vld [vmem:[%s0] sm:$0xff]
    %v46 = vpack.c.bf16 %v45, %v45
    %v47 = vld [vmem:[%s2] sm:$0xf]
    %v48 = vlaneseq
    %v49 = vshrl.u32 %v48, 7
    %v50 = vsub.s32 0, %v49
    %v51 = vrot.slane %v44, %v50
    %vm52 = vcmask 64512
    %v54 = vsel %vm52, %v46, 0
    %vm56 = vcmask 1043456
    %v58 = vsel %vm56, %v47, 0
    %60 = vmatprep.subr.bf16.mxu0 0
    %61 = vmatpush1.bf16.msra.mxu0 %v58
    %62 = vmatprep.subr.bf16.mxu0 0
    %63 = vmatpush1.bf16.msra.mxu0 0
    %64 = vmatprep.subr.bf16.mxu0 0
    %65 = vmatpush1.bf16.msra.mxu0 0
    %66 = vmatprep.subr.bf16.mxu0 0
    %67 = vmatpush1.bf16.msra.mxu0 0
    %68 = vmatprep.subr.bf16.mxu0 0
    %69 = vmatpush1.bf16.msra.mxu0 0
    %70 = vmatprep.subr.bf16.mxu0 0
    %71 = vmatpush1.bf16.msra.mxu0 0
    %72 = vmatprep.subr.bf16.mxu0 0
    %73 = vmatpush1.bf16.msra.mxu0 0
    %74 = vmatprep.subr.bf16.mxu0 0
    %75 = vmatpush1.bf16.msra.mxu0 0
    %76 = vmatprep.subr.bf16.mxu0 0
    %77 = vmatpush1.bf16.msra.mxu0 0
    %78 = vmatprep.subr.bf16.mxu0 0
    %79 = vmatpush1.bf16.msra.mxu0 0
    %80 = vmatprep.subr.bf16.mxu0 0
    %81 = vmatpush1.bf16.msra.mxu0 0
    %82 = vmatprep.subr.bf16.mxu0 0
    %83 = vmatpush1.bf16.msra.mxu0 0
    %84 = vmatprep.subr.bf16.mxu0 0
    %85 = vmatpush1.bf16.msra.mxu0 0
    %86 = vmatprep.subr.bf16.mxu0 0
    %87 = vmatpush1.bf16.msra.mxu0 0
    %88 = vmatprep.subr.bf16.mxu0 0
    %89 = vmatpush1.bf16.msra.mxu0 0
    %90 = vmatprep.subr.bf16.mxu0 0
    %91 = vmatpush1.bf16.msra.mxu0 0
    %92 = vmatprep.mubr.bf16.mxu0 0
    %93 = vmatmul.mubr.bf16.gmra.mrb[0].mxu0 %v54
    %v94 = vpop.f32.mrb[0].mxu0
    %v95 = vadd.f32 %v51, %v94
    %v96 = vpop.f32.mrb[0].mxu0
    %v97 = vpop.f32.mrb[0].mxu0
    %v98 = vpop.f32.mrb[0].mxu0
    %99 = vdwg.mxu0
    %v100 = vmax.f32 %v95, 0.0
    %v101 = vpack.c.bf16 %v100, %v100
    %v102 = vld [vmem:[#allocation4] sm:$0xf]
    %v103 = vld [vmem:[#allocation4 + $0x4] sm:$0xf]
    %v104 = vld [vmem:[#allocation4 + $0x8] sm:$0xf]
    %v105 = vld [vmem:[#allocation4 + $0xc] sm:$0xf]
    %v106 = vld [vmem:[#allocation4 + $0x10] sm:$0xf]
    %v107 = vld [vmem:[#allocation4 + $0x14] sm:$0xf]
    %v108 = vld [vmem:[#allocation4 + $0x18] sm:$0xf]
    %v109 = vld [vmem:[#allocation4 + $0x1c] sm:$0xf]
    %v110 = vld [vmem:[#allocation4 + $0x20] sm:$0xf]
    %v111 = vld [vmem:[#allocation4 + $0x24] sm:$0xf]
    %v112 = vld [vmem:[#allocation4 + $0x28] sm:$0xf]
    %v113 = vld [vmem:[#allocation4 + $0x2c] sm:$0xf]
    %v114 = vld [vmem:[#allocation4 + $0x30] sm:$0xf]
    %v115 = vld [vmem:[#allocation4 + $0x34] sm:$0xf]
    %v116 = vld [vmem:[#allocation4 + $0x38] sm:$0xf]
    %v117 = vld [vmem:[#allocation4 + $0x3c] sm:$0xf]
    %v118 = vlaneseq
    %v119 = vshrl.u32 %v118, 7
    %v120 = vsub.s32 1, %v119
    %v121 = vrot.slane %v44, %v120
    %v138 = vunpack.c.l.b16 %v102
    %v139 = vunpack.c.l.b16 %v103
    %v140 = vunpack.c.l.b16 %v104
    %v141 = vunpack.c.l.b16 %v105
    %v142 = vunpack.c.l.b16 %v106
    %v143 = vunpack.c.l.b16 %v107
    %v144 = vunpack.c.l.b16 %v108
    %v145 = vunpack.c.l.b16 %v109
    %v146 = vunpack.c.l.b16 %v110
    %v147 = vunpack.c.l.b16 %v111
    %v148 = vunpack.c.l.b16 %v112
    %v149 = vunpack.c.l.b16 %v113
    %v150 = vunpack.c.l.b16 %v114
    %v151 = vunpack.c.l.b16 %v115
    %v152 = vunpack.c.l.b16 %v116
    %v153 = vunpack.c.l.b16 %v117
    %v154 = vpack.c.b16 %v139, %v138
    %v155 = vpack.c.b16 %v141, %v140
    %v156 = vpack.c.b16 %v143, %v142
    %v157 = vpack.c.b16 %v145, %v144
    %v158 = vpack.c.b16 %v147, %v146
    %v159 = vpack.c.b16 %v149, %v148
    %v160 = vpack.c.b16 %v151, %v150
    %v161 = vpack.c.b16 %v153, %v152
    %170 = vmatprep.subr.bf16.mxu0 0
    %171 = vmatpush1.bf16.msra.mxu0 %v154
    %172 = vmatprep.subr.bf16.mxu0 0
    %173 = vmatpush1.bf16.msra.mxu0 %v155
    %174 = vmatprep.subr.bf16.mxu0 0
    %175 = vmatpush1.bf16.msra.mxu0 %v156
    %176 = vmatprep.subr.bf16.mxu0 0
    %177 = vmatpush1.bf16.msra.mxu0 %v157
    %178 = vmatprep.subr.bf16.mxu0 0
    %179 = vmatpush1.bf16.msra.mxu0 %v158
    %180 = vmatprep.subr.bf16.mxu0 0
    %181 = vmatpush1.bf16.msra.mxu0 %v159
    %182 = vmatprep.subr.bf16.mxu0 0
    %183 = vmatpush1.bf16.msra.mxu0 %v160
    %184 = vmatprep.subr.bf16.mxu0 0
    %185 = vmatpush1.bf16.msra.mxu0 %v161
    %186 = vmatprep.subr.bf16.mxu0 0
    %187 = vmatpush1.bf16.msra.mxu0 0
    %188 = vmatprep.subr.bf16.mxu0 0
    %189 = vmatpush1.bf16.msra.mxu0 0
    %190 = vmatprep.subr.bf16.mxu0 0
    %191 = vmatpush1.bf16.msra.mxu0 0
    %192 = vmatprep.subr.bf16.mxu0 0
    %193 = vmatpush1.bf16.msra.mxu0 0
    %194 = vmatprep.subr.bf16.mxu0 0
    %195 = vmatpush1.bf16.msra.mxu0 0
    %196 = vmatprep.subr.bf16.mxu0 0
    %197 = vmatpush1.bf16.msra.mxu0 0
    %198 = vmatprep.subr.bf16.mxu0 0
    %199 = vmatpush1.bf16.msra.mxu0 0
    %200 = vmatprep.subr.bf16.mxu0 0
    %201 = vmatpush1.bf16.msra.mxu0 0
    %202 = vmatprep.mubr.bf16.mxu0 0
    %203 = vmatmul.mubr.bf16.gmra.mrb[0].mxu0 %v101
    %v204 = vpop.f32.mrb[0].mxu0
    %v205 = vadd.f32 %v121, %v204
    %v206 = vpop.f32.mrb[0].mxu0
    %v207 = vpop.f32.mrb[0].mxu0
    %v208 = vpop.f32.mrb[0].mxu0
    %209 = vdwg.mxu0
    %v210 = vmax.f32 %v205, 0.0
    %v211 = vpack.c.bf16 %v210, %v210
    %v212 = vld [vmem:[#allocation4 + $0x40] sm:$0xf]
    %v213 = vld [vmem:[#allocation4 + $0x44] sm:$0xf]
    %v214 = vld [vmem:[#allocation4 + $0x48] sm:$0xf]
    %v215 = vld [vmem:[#allocation4 + $0x4c] sm:$0xf]
    %v216 = vld [vmem:[#allocation4 + $0x50] sm:$0xf]
    %v217 = vld [vmem:[#allocation4 + $0x54] sm:$0xf]
    %v218 = vld [vmem:[#allocation4 + $0x58] sm:$0xf]
    %v219 = vld [vmem:[#allocation4 + $0x5c] sm:$0xf]
    %v220 = vld [vmem:[#allocation4 + $0x60] sm:$0xf]
    %v221 = vld [vmem:[#allocation4 + $0x64] sm:$0xf]
    %v222 = vld [vmem:[#allocation4 + $0x68] sm:$0xf]
    %v223 = vld [vmem:[#allocation4 + $0x6c] sm:$0xf]
    %v224 = vld [vmem:[#allocation4 + $0x70] sm:$0xf]
    %v225 = vld [vmem:[#allocation4 + $0x74] sm:$0xf]
    %v226 = vld [vmem:[#allocation4 + $0x78] sm:$0xf]
    %v227 = vld [vmem:[#allocation4 + $0x7c] sm:$0xf]
    %v228 = vlaneseq
    %v229 = vshrl.u32 %v228, 7
    %v230 = vsub.s32 2, %v229
    %v231 = vrot.slane %v44, %v230
    %v248 = vunpack.c.l.b16 %v212
    %v249 = vunpack.c.l.b16 %v213
    %v250 = vunpack.c.l.b16 %v214
    %v251 = vunpack.c.l.b16 %v215
    %v252 = vunpack.c.l.b16 %v216
    %v253 = vunpack.c.l.b16 %v217
    %v254 = vunpack.c.l.b16 %v218
    %v255 = vunpack.c.l.b16 %v219
    %v256 = vunpack.c.l.b16 %v220
    %v257 = vunpack.c.l.b16 %v221
    %v258 = vunpack.c.l.b16 %v222
    %v259 = vunpack.c.l.b16 %v223
    %v260 = vunpack.c.l.b16 %v224
    %v261 = vunpack.c.l.b16 %v225
    %v262 = vunpack.c.l.b16 %v226
    %v263 = vunpack.c.l.b16 %v227
    %v264 = vpack.c.b16 %v249, %v248
    %v265 = vpack.c.b16 %v251, %v250
    %v266 = vpack.c.b16 %v253, %v252
    %v267 = vpack.c.b16 %v255, %v254
    %v268 = vpack.c.b16 %v257, %v256
    %v269 = vpack.c.b16 %v259, %v258
    %v270 = vpack.c.b16 %v261, %v260
    %v271 = vpack.c.b16 %v263, %v262
    %280 = vmatprep.subr.bf16.mxu0 0
    %281 = vmatpush1.bf16.msra.mxu0 %v264
    %282 = vmatprep.subr.bf16.mxu0 0
    %283 = vmatpush1.bf16.msra.mxu0 %v265
    %284 = vmatprep.subr.bf16.mxu0 0
    %285 = vmatpush1.bf16.msra.mxu0 %v266
    %286 = vmatprep.subr.bf16.mxu0 0
    %287 = vmatpush1.bf16.msra.mxu0 %v267
    %288 = vmatprep.subr.bf16.mxu0 0
    %289 = vmatpush1.bf16.msra.mxu0 %v268
    %290 = vmatprep.subr.bf16.mxu0 0
    %291 = vmatpush1.bf16.msra.mxu0 %v269
    %292 = vmatprep.subr.bf16.mxu0 0
    %293 = vmatpush1.bf16.msra.mxu0 %v270
    %294 = vmatprep.subr.bf16.mxu0 0
    %295 = vmatpush1.bf16.msra.mxu0 %v271
    %296 = vmatprep.subr.bf16.mxu0 0
    %297 = vmatpush1.bf16.msra.mxu0 0
    %298 = vmatprep.subr.bf16.mxu0 0
    %299 = vmatpush1.bf16.msra.mxu0 0
    %300 = vmatprep.subr.bf16.mxu0 0
    %301 = vmatpush1.bf16.msra.mxu0 0
    %302 = vmatprep.subr.bf16.mxu0 0
    %303 = vmatpush1.bf16.msra.mxu0 0
    %304 = vmatprep.subr.bf16.mxu0 0
    %305 = vmatpush1.bf16.msra.mxu0 0
    %306 = vmatprep.subr.bf16.mxu0 0
    %307 = vmatpush1.bf16.msra.mxu0 0
    %308 = vmatprep.subr.bf16.mxu0 0
    %309 = vmatpush1.bf16.msra.mxu0 0
    %310 = vmatprep.subr.bf16.mxu0 0
    %311 = vmatpush1.bf16.msra.mxu0 0
    %312 = vmatprep.mubr.bf16.mxu0 0
    %313 = vmatmul.mubr.bf16.gmra.mrb[0].mxu0 %v211
    %v314 = vpop.f32.mrb[0].mxu0
    %v315 = vadd.f32 %v231, %v314
    %v316 = vpop.f32.mrb[0].mxu0
    %v317 = vpop.f32.mrb[0].mxu0
    %v318 = vpop.f32.mrb[0].mxu0
    %319 = vdwg.mxu0
    %320 = vst [vmem:[#allocation2] sm:$0xff] %v315
    %v321 = vld [vmem:[#allocation4 + $0x80] sm:$0xf]
    %v322 = vld [vmem:[#allocation4 + $0x84] sm:$0xf]
    %v323 = vld [vmem:[#allocation4 + $0x88] sm:$0xf]
    %v324 = vld [vmem:[#allocation4 + $0x8c] sm:$0xf]
    %v325 = vld [vmem:[#allocation4 + $0x90] sm:$0xf]
    %v326 = vld [vmem:[#allocation4 + $0x94] sm:$0xf]
    %v327 = vld [vmem:[#allocation4 + $0x98] sm:$0xf]
    %v328 = vld [vmem:[#allocation4 + $0x9c] sm:$0xf]
    %v329 = vld [vmem:[#allocation4 + $0xa0] sm:$0xf]
    %v330 = vld [vmem:[#allocation4 + $0xa4] sm:$0xf]
    %v331 = vld [vmem:[#allocation4 + $0xa8] sm:$0xf]
    %v332 = vld [vmem:[#allocation4 + $0xac] sm:$0xf]
    %v333 = vld [vmem:[#allocation4 + $0xb0] sm:$0xf]
    %v334 = vld [vmem:[#allocation4 + $0xb4] sm:$0xf]
    %v335 = vld [vmem:[#allocation4 + $0xb8] sm:$0xf]
    %v336 = vld [vmem:[#allocation4 + $0xbc] sm:$0xf]
    %v337 = vld [vmem:[#allocation7] sm:$0xff]
    %v338 = vld [vmem:[#allocation2] sm:$0xff]
    %v339 = vpack.c.bf16 %v337, %v337
    %v356 = vunpack.c.l.b16 %v321
    %v357 = vunpack.c.l.b16 %v322
    %v358 = vunpack.c.l.b16 %v323
    %v359 = vunpack.c.l.b16 %v324
    %v360 = vunpack.c.l.b16 %v325
    %v361 = vunpack.c.l.b16 %v326
    %v362 = vunpack.c.l.b16 %v327
    %v363 = vunpack.c.l.b16 %v328
    %v364 = vunpack.c.l.b16 %v329
    %v365 = vunpack.c.l.b16 %v330
    %v366 = vunpack.c.l.b16 %v331
    %v367 = vunpack.c.l.b16 %v332
    %v368 = vunpack.c.l.b16 %v333
    %v369 = vunpack.c.l.b16 %v334
    %v370 = vunpack.c.l.b16 %v335
    %v371 = vunpack.c.l.b16 %v336
    %v372 = vpack.c.b16 %v357, %v356
    %v373 = vpack.c.b16 %v359, %v358
    %v374 = vpack.c.b16 %v361, %v360
    %v375 = vpack.c.b16 %v363, %v362
    %v376 = vpack.c.b16 %v365, %v364
    %v377 = vpack.c.b16 %v367, %v366
    %v378 = vpack.c.b16 %v369, %v368
    %v379 = vpack.c.b16 %v371, %v370
    %388 = vmatprep.subr.bf16.mxu0 0
    %389 = vmatpush1.bf16.msra.mxu0 %v372
    %390 = vmatprep.subr.bf16.mxu0 0
    %391 = vmatpush1.bf16.msra.mxu0 %v373
    %392 = vmatprep.subr.bf16.mxu0 0
    %393 = vmatpush1.bf16.msra.mxu0 %v374
    %394 = vmatprep.subr.bf16.mxu0 0
    %395 = vmatpush1.bf16.msra.mxu0 %v375
    %396 = vmatprep.subr.bf16.mxu0 0
    %397 = vmatpush1.bf16.msra.mxu0 %v376
    %398 = vmatprep.subr.bf16.mxu0 0
    %399 = vmatpush1.bf16.msra.mxu0 %v377
    %400 = vmatprep.subr.bf16.mxu0 0
    %401 = vmatpush1.bf16.msra.mxu0 %v378
    %402 = vmatprep.subr.bf16.mxu0 0
    %403 = vmatpush1.bf16.msra.mxu0 %v379
    %404 = vmatprep.subr.bf16.mxu0 0
    %405 = vmatpush1.bf16.msra.mxu0 0
    %406 = vmatprep.subr.bf16.mxu0 0
    %407 = vmatpush1.bf16.msra.mxu0 0
    %408 = vmatprep.subr.bf16.mxu0 0
    %409 = vmatpush1.bf16.msra.mxu0 0
    %410 = vmatprep.subr.bf16.mxu0 0
    %411 = vmatpush1.bf16.msra.mxu0 0
    %412 = vmatprep.subr.bf16.mxu0 0
    %413 = vmatpush1.bf16.msra.mxu0 0
    %414 = vmatprep.subr.bf16.mxu0 0
    %415 = vmatpush1.bf16.msra.mxu0 0
    %416 = vmatprep.subr.bf16.mxu0 0
    %417 = vmatpush1.bf16.msra.mxu0 0
    %418 = vmatprep.subr.bf16.mxu0 0
    %419 = vmatpush1.bf16.msra.mxu0 0
    %420 = vmatprep.mubr.bf16.mxu0 0
    %421 = vmatmul.mubr.bf16.gmra.mrb[0].mxu0 %v339
    %v422 = vpop.f32.mrb[0].mxu0
    %v423 = vadd.f32 0.0, %v422
    %v424 = vpop.f32.mrb[0].mxu0
    %v425 = vpop.f32.mrb[0].mxu0
    %v426 = vpop.f32.mrb[0].mxu0
    %427 = vdwg.mxu0
    %v428 = vadd.f32 %v338, %v423
    %v429 = vmax.f32 %v428, 0.0
    %430 = vst [vmem:[#allocation3] sm:$0xff] %v429
    %431 = vst [vmem:[#allocation7] sm:$0xff] %v429
    %v432 = vld [vmem:[#allocation3] sm:$0xff]
    %v433 = vpack.c.bf16 %v432, %v432
    %v434 = vld [vmem:[#allocation4 + $0xc0] sm:$0xf]
    %v435 = vld [vmem:[#allocation4 + $0xc4] sm:$0xf]
    %v436 = vld [vmem:[#allocation4 + $0xc8] sm:$0xf]
    %v437 = vld [vmem:[#allocation4 + $0xcc] sm:$0xf]
    %v438 = vld [vmem:[#allocation4 + $0xd0] sm:$0xf]
    %v439 = vld [vmem:[#allocation4 + $0xd4] sm:$0xf]
    %v440 = vld [vmem:[#allocation4 + $0xd8] sm:$0xf]
    %v441 = vld [vmem:[#allocation4 + $0xdc] sm:$0xf]
    %v442 = vld [vmem:[#allocation4 + $0xe0] sm:$0xf]
    %v443 = vld [vmem:[#allocation4 + $0xe4] sm:$0xf]
    %v444 = vld [vmem:[#allocation4 + $0xe8] sm:$0xf]
    %v445 = vld [vmem:[#allocation4 + $0xec] sm:$0xf]
    %v446 = vld [vmem:[#allocation4 + $0xf0] sm:$0xf]
    %v447 = vld [vmem:[#allocation4 + $0xf4] sm:$0xf]
    %v448 = vld [vmem:[#allocation4 + $0xf8] sm:$0xf]
    %v449 = vld [vmem:[#allocation4 + $0xfc] sm:$0xf]
    %v450 = vlaneseq
    %v451 = vshrl.u32 %v450, 7
    %v452 = vsub.s32 3, %v451
    %v453 = vrot.slane %v44, %v452
    %v470 = vunpack.c.l.b16 %v434
    %v471 = vunpack.c.l.b16 %v435
    %v472 = vunpack.c.l.b16 %v436
    %v473 = vunpack.c.l.b16 %v437
    %v474 = vunpack.c.l.b16 %v438
    %v475 = vunpack.c.l.b16 %v439
    %v476 = vunpack.c.l.b16 %v440
    %v477 = vunpack.c.l.b16 %v441
    %v478 = vunpack.c.l.b16 %v442
    %v479 = vunpack.c.l.b16 %v443
    %v480 = vunpack.c.l.b16 %v444
    %v481 = vunpack.c.l.b16 %v445
    %v482 = vunpack.c.l.b16 %v446
    %v483 = vunpack.c.l.b16 %v447
    %v484 = vunpack.c.l.b16 %v448
    %v485 = vunpack.c.l.b16 %v449
    %v486 = vpack.c.b16 %v471, %v470
    %v487 = vpack.c.b16 %v473, %v472
    %v488 = vpack.c.b16 %v475, %v474
    %v489 = vpack.c.b16 %v477, %v476
    %v490 = vpack.c.b16 %v479, %v478
    %v491 = vpack.c.b16 %v481, %v480
    %v492 = vpack.c.b16 %v483, %v482
    %v493 = vpack.c.b16 %v485, %v484
    %502 = vmatprep.subr.bf16.mxu0 0
    %503 = vmatpush1.bf16.msra.mxu0 %v486
    %504 = vmatprep.subr.bf16.mxu0 0
    %505 = vmatpush1.bf16.msra.mxu0 %v487
    %506 = vmatprep.subr.bf16.mxu0 0
    %507 = vmatpush1.bf16.msra.mxu0 %v488
    %508 = vmatprep.subr.bf16.mxu0 0
    %509 = vmatpush1.bf16.msra.mxu0 %v489
    %510 = vmatprep.subr.bf16.mxu0 0
    %511 = vmatpush1.bf16.msra.mxu0 %v490
    %512 = vmatprep.subr.bf16.mxu0 0
    %513 = vmatpush1.bf16.msra.mxu0 %v491
    %514 = vmatprep.subr.bf16.mxu0 0
    %515 = vmatpush1.bf16.msra.mxu0 %v492
    %516 = vmatprep.subr.bf16.mxu0 0
    %517 = vmatpush1.bf16.msra.mxu0 %v493
    %518 = vmatprep.subr.bf16.mxu0 0
    %519 = vmatpush1.bf16.msra.mxu0 0
    %520 = vmatprep.subr.bf16.mxu0 0
    %521 = vmatpush1.bf16.msra.mxu0 0
    %522 = vmatprep.subr.bf16.mxu0 0
    %523 = vmatpush1.bf16.msra.mxu0 0
    %524 = vmatprep.subr.bf16.mxu0 0
    %525 = vmatpush1.bf16.msra.mxu0 0
    %526 = vmatprep.subr.bf16.mxu0 0
    %527 = vmatpush1.bf16.msra.mxu0 0
    %528 = vmatprep.subr.bf16.mxu0 0
    %529 = vmatpush1.bf16.msra.mxu0 0
    %530 = vmatprep.subr.bf16.mxu0 0
    %531 = vmatpush1.bf16.msra.mxu0 0
    %532 = vmatprep.subr.bf16.mxu0 0
    %533 = vmatpush1.bf16.msra.mxu0 0
    %534 = vmatprep.mubr.bf16.mxu0 0
    %535 = vmatmul.mubr.bf16.gmra.mrb[0].mxu0 %v433
    %v536 = vpop.f32.mrb[0].mxu0
    %v537 = vadd.f32 %v453, %v536
    %v538 = vpop.f32.mrb[0].mxu0
    %v539 = vpop.f32.mrb[0].mxu0
    %v540 = vpop.f32.mrb[0].mxu0
    %541 = vdwg.mxu0
    %v542 = vmax.f32 %v537, 0.0
    %v543 = vpack.c.bf16 %v542, %v542
    %v544 = vld [vmem:[#allocation4 + $0x100] sm:$0xf]
    %v545 = vld [vmem:[#allocation4 + $0x104] sm:$0xf]
    %v546 = vld [vmem:[#allocation4 + $0x108] sm:$0xf]
    %v547 = vld [vmem:[#allocation4 + $0x10c] sm:$0xf]
    %v548 = vld [vmem:[#allocation4 + $0x110] sm:$0xf]
    %v549 = vld [vmem:[#allocation4 + $0x114] sm:$0xf]
    %v550 = vld [vmem:[#allocation4 + $0x118] sm:$0xf]
    %v551 = vld [vmem:[#allocation4 + $0x11c] sm:$0xf]
    %v552 = vld [vmem:[#allocation4 + $0x120] sm:$0xf]
    %v553 = vld [vmem:[#allocation4 + $0x124] sm:$0xf]
    %v554 = vld [vmem:[#allocation4 + $0x128] sm:$0xf]
    %v555 = vld [vmem:[#allocation4 + $0x12c] sm:$0xf]
    %v556 = vld [vmem:[#allocation4 + $0x130] sm:$0xf]
    %v557 = vld [vmem:[#allocation4 + $0x134] sm:$0xf]
    %v558 = vld [vmem:[#allocation4 + $0x138] sm:$0xf]
    %v559 = vld [vmem:[#allocation4 + $0x13c] sm:$0xf]
    %v560 = vlaneseq
    %v561 = vshrl.u32 %v560, 7
    %v562 = vsub.s32 4, %v561
    %v563 = vrot.slane %v44, %v562
    %v580 = vunpack.c.l.b16 %v544
    %v581 = vunpack.c.l.b16 %v545
    %v582 = vunpack.c.l.b16 %v546
    %v583 = vunpack.c.l.b16 %v547
    %v584 = vunpack.c.l.b16 %v548
    %v585 = vunpack.c.l.b16 %v549
    %v586 = vunpack.c.l.b16 %v550
    %v587 = vunpack.c.l.b16 %v551
    %v588 = vunpack.c.l.b16 %v552
    %v589 = vunpack.c.l.b16 %v553
    %v590 = vunpack.c.l.b16 %v554
    %v591 = vunpack.c.l.b16 %v555
    %v592 = vunpack.c.l.b16 %v556
    %v593 = vunpack.c.l.b16 %v557
    %v594 = vunpack.c.l.b16 %v558
    %v595 = vunpack.c.l.b16 %v559
    %v596 = vpack.c.b16 %v581, %v580
    %v597 = vpack.c.b16 %v583, %v582
    %v598 = vpack.c.b16 %v585, %v584
    %v599 = vpack.c.b16 %v587, %v586
    %v600 = vpack.c.b16 %v589, %v588
    %v601 = vpack.c.b16 %v591, %v590
    %v602 = vpack.c.b16 %v593, %v592
    %v603 = vpack.c.b16 %v595, %v594
    %612 = vmatprep.subr.bf16.mxu0 0
    %613 = vmatpush1.bf16.msra.mxu0 %v596
    %614 = vmatprep.subr.bf16.mxu0 0
    %615 = vmatpush1.bf16.msra.mxu0 %v597
    %616 = vmatprep.subr.bf16.mxu0 0
    %617 = vmatpush1.bf16.msra.mxu0 %v598
    %618 = vmatprep.subr.bf16.mxu0 0
    %619 = vmatpush1.bf16.msra.mxu0 %v599
    %620 = vmatprep.subr.bf16.mxu0 0
    %621 = vmatpush1.bf16.msra.mxu0 %v600
    %622 = vmatprep.subr.bf16.mxu0 0
    %623 = vmatpush1.bf16.msra.mxu0 %v601
    %624 = vmatprep.subr.bf16.mxu0 0
    %625 = vmatpush1.bf16.msra.mxu0 %v602
    %626 = vmatprep.subr.bf16.mxu0 0
    %627 = vmatpush1.bf16.msra.mxu0 %v603
    %628 = vmatprep.subr.bf16.mxu0 0
    %629 = vmatpush1.bf16.msra.mxu0 0
    %630 = vmatprep.subr.bf16.mxu0 0
    %631 = vmatpush1.bf16.msra.mxu0 0
    %632 = vmatprep.subr.bf16.mxu0 0
    %633 = vmatpush1.bf16.msra.mxu0 0
    %634 = vmatprep.subr.bf16.mxu0 0
    %635 = vmatpush1.bf16.msra.mxu0 0
    %636 = vmatprep.subr.bf16.mxu0 0
    %637 = vmatpush1.bf16.msra.mxu0 0
    %638 = vmatprep.subr.bf16.mxu0 0
    %639 = vmatpush1.bf16.msra.mxu0 0
    %640 = vmatprep.subr.bf16.mxu0 0
    %641 = vmatpush1.bf16.msra.mxu0 0
    %642 = vmatprep.subr.bf16.mxu0 0
    %643 = vmatpush1.bf16.msra.mxu0 0
    %644 = vmatprep.mubr.bf16.mxu0 0
    %645 = vmatmul.mubr.bf16.gmra.mrb[0].mxu0 %v543
    %v646 = vpop.f32.mrb[0].mxu0
    %v647 = vadd.f32 %v563, %v646
    %v648 = vpop.f32.mrb[0].mxu0
    %v649 = vpop.f32.mrb[0].mxu0
    %v650 = vpop.f32.mrb[0].mxu0
    %651 = vdwg.mxu0
    %652 = vst [vmem:[%s5] sm:$0xff] %v647
    // Predicated region
    $region30: #{rnn_recursive_forward.1} parent=1 // pred_check
      _
    $region31: #{rnn_recursive_forward.1} parent=1 // pred_check_branch
      %654 = sbr.rel (0) target = $region33
    $region32: #{rnn_recursive_forward.1} parent=1 // pred_region
      _
    $region33: #{rnn_recursive_forward.1} parent=1 // pred_fallthru
      _
    // Predicated region
    $region34: #{rnn_recursive_forward.1} parent=1 // pred_check
      _
    $region35: #{rnn_recursive_forward.1} parent=1 // pred_check_branch
      %656 = sbr.rel (0) target = $region37
    $region36: #{rnn_recursive_forward.1} parent=1 // pred_region
      %s658 = ssub.s32 128, 128
      %659 = vsyncadd [#allocation6], %s658
      %s661 = sshll.u32 [#allocation7], 4
      %s662 = int_to_ptr.vmem [resolvable:$true] %s661
      %664 = dma.vmem_to_hbm [thread:$0]  %s662, 128, %s6, [#allocation6]
    $region37: #{rnn_recursive_forward.1} parent=1 // pred_fallthru
      _
    // Predicated region
    $region38: #{rnn_recursive_forward.1} parent=1 // pred_check
      _
    $region39: #{rnn_recursive_forward.1} parent=1 // pred_check_branch
      %666 = sbr.rel (0) target = $region41
    $region40: #{rnn_recursive_forward.1} parent=1 // pred_region
      _
    $region41: #{rnn_recursive_forward.1} parent=1 // pred_fallthru
      _
    // Predicated region
    $region42: #{rnn_recursive_forward.1} parent=1 // pred_check
      _
    $region43: #{rnn_recursive_forward.1} parent=1 // pred_check_branch
      %668 = sbr.rel (0) target = $region45
    $region44: #{rnn_recursive_forward.1} parent=1 // pred_region
      %669 = dma.done [#allocation6], 128
    $region45: #{rnn_recursive_forward.1} parent=1 // pred_fallthru
      _
    %670 = vsyncpa [#allocation5], 1
    %671 = vsyncpa [#allocation6], 1

</llo_original>
